<compile_context>
chip_gen: v7x
topology: tpu7x:2x2x1
jax: 0.10.0
libtpu: 0.0.40
codegen_flags: <defaults>
</compile_context>

<pallas_src>
import jax
import jax.numpy as jnp
from jax.experimental import pallas as pl
from jax.experimental.pallas import tpu as pltpu


def _round_up(n, m):
    return ((n + m - 1) // m) * m


def _policy_mlp_kernel(expl_ref, x_ref, w1_ref, b1_ref,
                       w2_ref, b2_ref, w3_ref, b3_ref, out_ref):
    """Fused forward for one batch tile:
    Linear+ReLU -> Linear+ReLU -> Linear -> *exploration -> softmax(dim=1).
    """
    x = x_ref[...]                                       # (TB, S)
    expl = expl_ref[0]                                   # f32 scalar from SMEM

    # Hidden layer 1: Linear + ReLU (MXU matmul, f32 accumulate)
    h1 = jnp.dot(x, w1_ref[...], preferred_element_type=jnp.float32) + b1_ref[...]
    h1 = jnp.maximum(h1, 0.0)

    # Hidden layer 2: Linear + ReLU
    h2 = jnp.dot(h1, w2_ref[...], preferred_element_type=jnp.float32) + b2_ref[...]
    h2 = jnp.maximum(h2, 0.0)

    # Output layer + exploration scaling
    logits = jnp.dot(h2, w3_ref[...], preferred_element_type=jnp.float32) + b3_ref[...]
    logits = expl * logits                               # (TB, A)

    # Numerically stable softmax along the action axis (dim=1).
    # Exact divide (not approx reciprocal): rows must sum to 1 for sampling.
    m = jnp.max(logits, axis=-1, keepdims=True)
    e = jnp.exp(logits - m)
    denom = jnp.sum(e, axis=-1, keepdims=True)
    out_ref[...] = e / denom


def _pinned(shape):
    """BlockSpec for a weight/bias that stays resident across all grid steps."""
    zeros = (0,) * len(shape)
    return pl.BlockSpec(shape, lambda i: zeros)


@jax.jit
def policy_forward(x, params, exploration):
    """Full forward pass in one Pallas kernel, tiled over the batch."""
    w1, b1, w2, b2, w3, b3 = params
    B, S = x.shape
    H1 = w1.shape[1]
    H2 = w2.shape[1]
    A = w3.shape[1]

    # Scalar exploration factor lives in SMEM -> no recompiles when it decays.
    expl = jnp.reshape(jnp.asarray(exploration, jnp.float32), (1,))

    # Batch tiling:
    #  * B < 256: one tile (per-step ~0.35us overhead dominates; splitting loses).
    #  * B >= 256: >=2 grid steps so "parallel" can shard across v7x's 2 TCs
    #    (harmless single extra step on single-TC v5e/v6e), capped at 2048 rows
    #    (~a few MiB VMEM double-buffered: under every chip's scoped default).
    if B < 256:
        tile_b = B
    else:
        tile_b = min(_round_up(pl.cdiv(B, 2), 8), 2048)
    grid = (pl.cdiv(B, tile_b),)

    flops = 2 * B * (S * H1 + H1 * H2 + H2 * A)
    bytes_accessed = 4 * (B * S + S * H1 + H1 + H1 * H2 + H2
                          + H2 * A + A + B * A)
    cost = pl.CostEstimate(flops=flops, transcendentals=B * A,
                           bytes_accessed=bytes_accessed)

    return pl.pallas_call(
        _policy_mlp_kernel,
        out_shape=jax.ShapeDtypeStruct((B, A), jnp.float32),
        grid_spec=pltpu.PrefetchScalarGridSpec(
            num_scalar_prefetch=0,
            grid=grid,
            in_specs=[
                pl.BlockSpec(memory_space=pltpu.MemorySpace.SMEM),  # exploration
                pl.BlockSpec((tile_b, S), lambda i: (i, 0)),        # x batch tile
                _pinned(w1.shape), _pinned(b1.shape),
                _pinned(w2.shape), _pinned(b2.shape),
                _pinned(w3.shape), _pinned(b3.shape),
            ],
            out_specs=pl.BlockSpec((tile_b, A), lambda i: (i, 0)),
        ),
        compiler_params=pltpu.CompilerParams(
            dimension_semantics=("parallel",)),
        cost_estimate=cost,
    )(expl, x, w1, b1, w2, b2, w3, b3)


def init_params(key, no_of_states, hidden_units, no_of_actions):
    """Deterministic init mimicking nn.Linear default (uniform +-1/sqrt(fan_in)).

    Weights stored as (in, out); biases as (1, out) for TPU-friendly 2D layout.
    """
    dims = [no_of_states] + list(hidden_units) + [no_of_actions]
    params = []
    for i in range(len(dims) - 1):
        fan_in, fan_out = dims[i], dims[i + 1]
        key, kw, kb = jax.random.split(key, 3)
        bound = 1.0 / jnp.sqrt(jnp.float32(fan_in))
        w = jax.random.uniform(kw, (fan_in, fan_out), jnp.float32, -bound, bound)
        b = jax.random.uniform(kb, (1, fan_out), jnp.float32, -bound, bound)
        params.extend([w, b])
    return tuple(params)


def _reference(x, params, exploration):
    w1, b1, w2, b2, w3, b3 = params
    h = jnp.maximum(x @ w1 + b1, 0.0)
    h = jnp.maximum(h @ w2 + b2, 0.0)
    logits = (h @ w3 + b3) * exploration
    return jax.nn.softmax(logits, axis=1)


if __name__ == "__main__":
    # Small shapes consistent with the module's forward:
    # x: (batch, no_of_states); hidden_units = (32, 32); actions = 8.
    batch = 2
    no_of_states = 16
    hidden_units = (32, 32)
    no_of_actions = 8
    exploration = 0.9

    key = jax.random.PRNGKey(0)
    key, kx = jax.random.split(key)
    x = jax.random.normal(kx, (batch, no_of_states), jnp.float32)

    params = init_params(key, no_of_states, hidden_units, no_of_actions)

    out = policy_forward(x, params, exploration)
    out = jax.block_until_ready(out)

    ref = _reference(x, params, exploration)
    assert out.shape == (batch, no_of_actions)
    assert jnp.allclose(out, ref, atol=2e-3, rtol=2e-3)
    assert jnp.allclose(jnp.sum(out, axis=1), 1.0, atol=1e-5)

    # Exercise the multi-step (>=2 grid tiles, v7x dual-TC) path as well.
    key, kx2 = jax.random.split(key)
    x_big = jax.random.normal(kx2, (512, no_of_states), jnp.float32)
    out_big = jax.block_until_ready(policy_forward(x_big, params, exploration))
    ref_big = _reference(x_big, params, exploration)
    assert out_big.shape == (512, no_of_actions)
    assert jnp.allclose(out_big, ref_big, atol=2e-3, rtol=2e-3)

    print("KERNEL_OK")
</pallas_src>

<mosaic_0001>
module attributes {stable_mosaic.version = 11 : i64} {
  func.func @_policy_mlp_kernel(%arg0: i32, %arg1: memref<1xf32, #tpu.memory_space<smem>>, %arg2: memref<2x16xf32, #tpu.memory_space<vmem>>, %arg3: memref<16x32xf32, #tpu.memory_space<vmem>>, %arg4: memref<1x32xf32, #tpu.memory_space<vmem>>, %arg5: memref<32x32xf32, #tpu.memory_space<vmem>>, %arg6: memref<1x32xf32, #tpu.memory_space<vmem>>, %arg7: memref<32x8xf32, #tpu.memory_space<vmem>>, %arg8: memref<1x8xf32, #tpu.memory_space<vmem>>, %arg9: memref<2x8xf32, #tpu.memory_space<vmem>>) attributes {dimension_semantics = [#tpu.dimension_semantics<parallel>], iteration_bounds = array<i64: 1>, scalar_prefetch = 0 : i64, scratch_operands = 0 : i64, tpu.core_type = #tpu.core_type<tc>, window_params = [{transform_indices = @transform_0, window_bounds = array<i64: 1>}, {transform_indices = @transform_1, window_bounds = array<i64: 2, 16>}, {pipeline_mode = #tpu.pipeline_mode<synchronous>, transform_indices = @transform_2, window_bounds = array<i64: 16, 32>}, {pipeline_mode = #tpu.pipeline_mode<synchronous>, transform_indices = @transform_3, window_bounds = array<i64: 1, 32>}, {pipeline_mode = #tpu.pipeline_mode<synchronous>, transform_indices = @transform_4, window_bounds = array<i64: 32, 32>}, {pipeline_mode = #tpu.pipeline_mode<synchronous>, transform_indices = @transform_5, window_bounds = array<i64: 1, 32>}, {pipeline_mode = #tpu.pipeline_mode<synchronous>, transform_indices = @transform_6, window_bounds = array<i64: 32, 8>}, {pipeline_mode = #tpu.pipeline_mode<synchronous>, transform_indices = @transform_7, window_bounds = array<i64: 1, 8>}, {transform_indices = @transform_8, window_bounds = array<i64: 2, 8>}]} {
    %c0 = arith.constant 0 : index
    %c0_0 = arith.constant 0 : index
    %0 = vector.load %arg2[%c0, %c0_0] : memref<2x16xf32, #tpu.memory_space<vmem>>, vector<2x16xf32>
    %c0_1 = arith.constant 0 : index
    %1 = memref.load %arg1[%c0_1] : memref<1xf32, #tpu.memory_space<smem>>
    %c0_2 = arith.constant 0 : index
    %c0_3 = arith.constant 0 : index
    %2 = vector.load %arg3[%c0_2, %c0_3] : memref<16x32xf32, #tpu.memory_space<vmem>>, vector<16x32xf32>
    %cst = arith.constant dense<0.000000e+00> : vector<2x32xf32>
    %3 = tpu.matmul %0, %2, %cst {dimension_numbers = #tpu.dot_dimension_numbers<[1], [0], [0], [1], [0, 0, 1, 1], [], []>} : vector<2x16xf32>, vector<16x32xf32>, vector<2x32xf32> -> vector<2x32xf32>
    %c0_4 = arith.constant 0 : index
    %c0_5 = arith.constant 0 : index
    %4 = vector.load %arg4[%c0_4, %c0_5] : memref<1x32xf32, #tpu.memory_space<vmem>>, vector<1x32xf32>
    %5 = vector.broadcast %4 : vector<1x32xf32> to vector<2x32xf32>
    %6 = arith.addf %3, %5 : vector<2x32xf32>
    %cst_6 = arith.constant 0.000000e+00 : f32
    %7 = vector.broadcast %cst_6 : f32 to vector<2x32xf32>
    %8 = arith.maximumf %6, %7 : vector<2x32xf32>
    %c0_7 = arith.constant 0 : index
    %c0_8 = arith.constant 0 : index
    %9 = vector.load %arg5[%c0_7, %c0_8] : memref<32x32xf32, #tpu.memory_space<vmem>>, vector<32x32xf32>
    %cst_9 = arith.constant dense<0.000000e+00> : vector<2x32xf32>
    %10 = tpu.matmul %8, %9, %cst_9 {dimension_numbers = #tpu.dot_dimension_numbers<[1], [0], [0], [1], [0, 0, 1, 1], [], []>} : vector<2x32xf32>, vector<32x32xf32>, vector<2x32xf32> -> vector<2x32xf32>
    %c0_10 = arith.constant 0 : index
    %c0_11 = arith.constant 0 : index
    %11 = vector.load %arg6[%c0_10, %c0_11] : memref<1x32xf32, #tpu.memory_space<vmem>>, vector<1x32xf32>
    %12 = vector.broadcast %11 : vector<1x32xf32> to vector<2x32xf32>
    %13 = arith.addf %10, %12 : vector<2x32xf32>
    %cst_12 = arith.constant 0.000000e+00 : f32
    %14 = vector.broadcast %cst_12 : f32 to vector<2x32xf32>
    %15 = arith.maximumf %13, %14 : vector<2x32xf32>
    %c0_13 = arith.constant 0 : index
    %c0_14 = arith.constant 0 : index
    %16 = vector.load %arg7[%c0_13, %c0_14] : memref<32x8xf32, #tpu.memory_space<vmem>>, vector<32x8xf32>
    %cst_15 = arith.constant dense<0.000000e+00> : vector<2x8xf32>
    %17 = tpu.matmul %15, %16, %cst_15 {dimension_numbers = #tpu.dot_dimension_numbers<[1], [0], [0], [1], [0, 0, 1, 1], [], []>} : vector<2x32xf32>, vector<32x8xf32>, vector<2x8xf32> -> vector<2x8xf32>
    %c0_16 = arith.constant 0 : index
    %c0_17 = arith.constant 0 : index
    %18 = vector.load %arg8[%c0_16, %c0_17] : memref<1x8xf32, #tpu.memory_space<vmem>>, vector<1x8xf32>
    %19 = vector.broadcast %18 : vector<1x8xf32> to vector<2x8xf32>
    %20 = arith.addf %17, %19 : vector<2x8xf32>
    %21 = vector.broadcast %1 : f32 to vector<2x8xf32>
    %22 = arith.mulf %21, %20 : vector<2x8xf32>
    %cst_18 = arith.constant dense<0xFF800000> : vector<2xf32>
    %23 = vector.multi_reduction <maximumf>, %22, %cst_18 [1] : vector<2x8xf32> to vector<2xf32>
    %24 = vector.shape_cast %23 : vector<2xf32> to vector<2x1xf32>
    %25 = vector.broadcast %24 : vector<2x1xf32> to vector<2x8xf32>
    %26 = arith.subf %22, %25 : vector<2x8xf32>
    %27 = math.exp %26 : vector<2x8xf32>
    %cst_19 = arith.constant dense<0.000000e+00> : vector<2xf32>
    %28 = vector.multi_reduction <add>, %27, %cst_19 [1] : vector<2x8xf32> to vector<2xf32>
    %29 = vector.shape_cast %28 : vector<2xf32> to vector<2x1xf32>
    %30 = vector.broadcast %29 : vector<2x1xf32> to vector<2x8xf32>
    %31 = arith.divf %27, %30 : vector<2x8xf32>
    %c0_20 = arith.constant 0 : index
    %c0_21 = arith.constant 0 : index
    %32 = vector.load %arg9[%c0_20, %c0_21] : memref<2x8xf32, #tpu.memory_space<vmem>>, vector<2x8xf32>
    tpu.vector_store %arg9[%c0_20, %c0_21], %31 {strides = array<i32>} : memref<2x8xf32, #tpu.memory_space<vmem>>, vector<2x8xf32>,
    return
  }
  func.func @transform_0(%arg0: i32) -> i32 {
    %c0_i32 = arith.constant 0 : i32
    %c0_i32_0 = arith.constant 0 : i32
    return %c0_i32 : i32
  }
  func.func @transform_1(%arg0: i32) -> (i32, i32) {
    %c0_i32 = arith.constant 0 : i32
    %c0_i32_0 = arith.constant 0 : i32
    return %arg0, %c0_i32 : i32, i32
  }
  func.func @transform_2(%arg0: i32) -> (i32, i32) {
    %c0_i32 = arith.constant 0 : i32
    %c0_i32_0 = arith.constant 0 : i32
    %c0_i32_1 = arith.constant 0 : i32
    return %c0_i32, %c0_i32_0 : i32, i32
  }
  func.func @transform_3(%arg0: i32) -> (i32, i32) {
    %c0_i32 = arith.constant 0 : i32
    %c0_i32_0 = arith.constant 0 : i32
    %c0_i32_1 = arith.constant 0 : i32
    return %c0_i32, %c0_i32_0 : i32, i32
  }
  func.func @transform_4(%arg0: i32) -> (i32, i32) {
    %c0_i32 = arith.constant 0 : i32
    %c0_i32_0 = arith.constant 0 : i32
    %c0_i32_1 = arith.constant 0 : i32
    return %c0_i32, %c0_i32_0 : i32, i32
  }
  func.func @transform_5(%arg0: i32) -> (i32, i32) {
    %c0_i32 = arith.constant 0 : i32
    %c0_i32_0 = arith.constant 0 : i32
    %c0_i32_1 = arith.constant 0 : i32
    return %c0_i32, %c0_i32_0 : i32, i32
  }
  func.func @transform_6(%arg0: i32) -> (i32, i32) {
    %c0_i32 = arith.constant 0 : i32
    %c0_i32_0 = arith.constant 0 : i32
    %c0_i32_1 = arith.constant 0 : i32
    return %c0_i32, %c0_i32_0 : i32, i32
  }
  func.func @transform_7(%arg0: i32) -> (i32, i32) {
    %c0_i32 = arith.constant 0 : i32
    %c0_i32_0 = arith.constant 0 : i32
    %c0_i32_1 = arith.constant 0 : i32
    return %c0_i32, %c0_i32_0 : i32, i32
  }
  func.func @transform_8(%arg0: i32) -> (i32, i32) {
    %c0_i32 = arith.constant 0 : i32
    %c0_i32_0 = arith.constant 0 : i32
    return %arg0, %c0_i32 : i32, i32
  }
}

</mosaic_0001>

<llo_original>
// kernel: policy_forward.1
$region0: #{policy_forward.1}
  #allocation0 [shape = 'u32[]', space=smem, size = 0x4, offset = 0x4, fixed_abs, tag = 'smem constant byte address 0x4 - core index']
  #allocation1 [shape = 'u32[144,128]{1,0:T(1,128)}', space=vmem, size = 0x12000, scoped, tag = 'internal scratch']
  #allocation2 [shape = 'f32[1]{0:T(128)S(6)}', space=smem, size = 0x200, scoped, tag = 'scoped memory for policy_forward.1']
  %s0 = inlined_call_operand.<no memory space> [shape: f32[1], index: 0, kind: input, shape index: {}]
  %s1 = inlined_call_operand.vmem [shape: f32[2,16], index: 1, kind: input, shape index: {}]
  %s2 = inlined_call_operand.vmem [shape: f32[16,32], index: 2, kind: input, shape index: {}]
  %s3 = inlined_call_operand.vmem [shape: f32[1,32], index: 3, kind: input, shape index: {}]
  %s4 = inlined_call_operand.vmem [shape: f32[32,32], index: 4, kind: input, shape index: {}]
  %s5 = inlined_call_operand.vmem [shape: f32[1,32], index: 5, kind: input, shape index: {}]
  %s6 = inlined_call_operand.vmem [shape: f32[32,8], index: 6, kind: input, shape index: {}]
  %s7 = inlined_call_operand.vmem [shape: f32[1,8], index: 7, kind: input, shape index: {}]
  %s8 = inlined_call_operand.hbm [shape: f32[2,8], index: 8, kind: output, shape index: {}]
  %s9 = sld [smem:[#allocation0]]
  $region42: #{policy_forward.1} parent=0
    _
  %s11 = ssub.s32 1, %s9
  %s12 = scalar_select 0, %s11, %s9
  %13 = sst [smem:[#allocation2]] %s0
  $region1: #{policy_forward.1} parent=0
    #allocation3 [shape = 'u8[1024]{0}', space=vmem, size = 0x400, scoped, tag = 'output window, operand 0, single buffered']
    #allocation4 [shape = 's32[1]{0}', space=sflag, size = 0x4, scoped, tag = 'scoped memory for policy_forward.1']
    %14 = vsyncpa [#allocation4], 0
    // Predicated region
    $region2: #{policy_forward.1} parent=1 // pred_check
      _
    $region3: #{policy_forward.1} parent=1 // pred_check_branch
      %16 = sbr.rel (0) target = $region5
    $region4: #{policy_forward.1} parent=1 // pred_region
      _
    $region5: #{policy_forward.1} parent=1 // pred_fallthru
      _
    // Predicated region
    $region6: #{policy_forward.1} parent=1 // pred_check
      _
    $region7: #{policy_forward.1} parent=1 // pred_check_branch
      %18 = sbr.rel (0) target = $region9
    $region8: #{policy_forward.1} parent=1 // pred_region
      _
    $region9: #{policy_forward.1} parent=1 // pred_fallthru
      _
    // Predicated region
    $region10: #{policy_forward.1} parent=1 // pred_check
      _
    $region11: #{policy_forward.1} parent=1 // pred_check_branch
      %20 = sbr.rel (0) target = $region13
    $region12: #{policy_forward.1} parent=1 // pred_region
      _
    $region13: #{policy_forward.1} parent=1 // pred_fallthru
      _
    // Predicated region
    $region14: #{policy_forward.1} parent=1 // pred_check
      _
    $region15: #{policy_forward.1} parent=1 // pred_check_branch
      %22 = sbr.rel (0) target = $region17
    $region16: #{policy_forward.1} parent=1 // pred_region
      _
    $region17: #{policy_forward.1} parent=1 // pred_fallthru
      _
    // Predicated region
    $region18: #{policy_forward.1} parent=1 // pred_check
      _
    $region19: #{policy_forward.1} parent=1 // pred_check_branch
      %24 = sbr.rel (0) target = $region21
    $region20: #{policy_forward.1} parent=1 // pred_region
      _
    $region21: #{policy_forward.1} parent=1 // pred_fallthru
      _
    // Predicated region
    $region22: #{policy_forward.1} parent=1 // pred_check
      _
    $region23: #{policy_forward.1} parent=1 // pred_check_branch
      %26 = sbr.rel (0) target = $region25
    $region24: #{policy_forward.1} parent=1 // pred_region
      _
    $region25: #{policy_forward.1} parent=1 // pred_fallthru
      _
    // Predicated region
    $region26: #{policy_forward.1} parent=1 // pred_check
      _
    $region27: #{policy_forward.1} parent=1 // pred_check_branch
      %28 = sbr.rel (0) target = $region29
    $region28: #{policy_forward.1} parent=1 // pred_region
      _
    $region29: #{policy_forward.1} parent=1 // pred_fallthru
      _
    // Predicated region
    $region30: #{policy_forward.1} parent=1 // pred_check
      _
    $region31: #{policy_forward.1} parent=1 // pred_check_branch
      %30 = sbr.rel (0) target = $region33
    $region32: #{policy_forward.1} parent=1 // pred_region
      _
    $region33: #{policy_forward.1} parent=1 // pred_fallthru
      _
    %v31 = vld [vmem:[%s1] sm:$0x3]
    %s32 = sld [smem:[#allocation2]]
    %v33 = vld [vmem:[%s2] sm:$0xff]
    %v34 = vld [vmem:[%s2 + $0x8] sm:$0xff]
    %v35 = vld [vmem:[%s3] sm:$0x1]
    %v37 = vlaneseq
    %v38 = vshrl.u32 %v37, 7
    %v39 = vsub.s32 0, %v38
    %v40 = vrot.slane %v35, %v39
    %vm42 = vcmask 130048
    %v44 = vsel %vm42, %v31, 0
    %46 = vmatprep.subr.mxu0 0.0
    %47 = vmatpush1.msra.mxu0 %v33
    %48 = vmatprep.subr.mxu0 0.0
    %49 = vmatpush1.msra.mxu0 %v34
    %50 = vmatprep.subr.mxu0 0.0
    %51 = vmatpush1.msra.mxu0 0.0
    %52 = vmatprep.subr.mxu0 0.0
    %53 = vmatpush1.msra.mxu0 0.0
    %54 = vmatprep.subr.mxu0 0.0
    %55 = vmatpush1.msra.mxu0 0.0
    %56 = vmatprep.subr.mxu0 0.0
    %57 = vmatpush1.msra.mxu0 0.0
    %58 = vmatprep.subr.mxu0 0.0
    %59 = vmatpush1.msra.mxu0 0.0
    %60 = vmatprep.subr.mxu0 0.0
    %61 = vmatpush1.msra.mxu0 0.0
    %62 = vmatprep.subr.mxu0 0.0
    %63 = vmatpush1.msra.mxu0 0.0
    %64 = vmatprep.subr.mxu0 0.0
    %65 = vmatpush1.msra.mxu0 0.0
    %66 = vmatprep.subr.mxu0 0.0
    %67 = vmatpush1.msra.mxu0 0.0
    %68 = vmatprep.subr.mxu0 0.0
    %69 = vmatpush1.msra.mxu0 0.0
    %70 = vmatprep.subr.mxu0 0.0
    %71 = vmatpush1.msra.mxu0 0.0
    %72 = vmatprep.subr.mxu0 0.0
    %73 = vmatpush1.msra.mxu0 0.0
    %74 = vmatprep.subr.mxu0 0.0
    %75 = vmatpush1.msra.mxu0 0.0
    %76 = vmatprep.subr.mxu0 0.0
    %77 = vmatpush1.msra.mxu0 0.0
    %78 = vmatprep.subr.mxu0 0.0
    %79 = vmatpush1.msra.mxu0 0.0
    %80 = vmatprep.subr.mxu0 0.0
    %81 = vmatpush1.msra.mxu0 0.0
    %82 = vmatprep.subr.mxu0 0.0
    %83 = vmatpush1.msra.mxu0 0.0
    %84 = vmatprep.subr.mxu0 0.0
    %85 = vmatpush1.msra.mxu0 0.0
    %86 = vmatprep.subr.mxu0 0.0
    %87 = vmatpush1.msra.mxu0 0.0
    %88 = vmatprep.subr.mxu0 0.0
    %89 = vmatpush1.msra.mxu0 0.0
    %90 = vmatprep.subr.mxu0 0.0
    %91 = vmatpush1.msra.mxu0 0.0
    %92 = vmatprep.subr.mxu0 0.0
    %93 = vmatpush1.msra.mxu0 0.0
    %94 = vmatprep.subr.mxu0 0.0
    %95 = vmatpush1.msra.mxu0 0.0
    %96 = vmatprep.subr.mxu0 0.0
    %97 = vmatpush1.msra.mxu0 0.0
    %98 = vmatprep.subr.mxu0 0.0
    %99 = vmatpush1.msra.mxu0 0.0
    %100 = vmatprep.subr.mxu0 0.0
    %101 = vmatpush1.msra.mxu0 0.0
    %102 = vmatprep.subr.mxu0 0.0
    %103 = vmatpush1.msra.mxu0 0.0
    %104 = vmatprep.subr.mxu0 0.0
    %105 = vmatpush1.msra.mxu0 0.0
    %106 = vmatprep.subr.mxu0 0.0
    %107 = vmatpush1.msra.mxu0 0.0
    %108 = vmatprep.subr.mxu0 0.0
    %109 = vmatpush1.msra.mxu0 0.0
    %110 = vmatprep.mubr.f32.mxu0 0.0
    %111 = vmatmul.mubr.f32.gmra.mrb[0].mxu0 %v44
    %v112 = vpop.f32.mrb[0].mxu0
    %v113 = vadd.f32 %v40, %v112
    %v114 = vpop.f32.mrb[0].mxu0
    %115 = vdwg.mxu0
    %v116 = vmax.f32 %v113, 0.0
    %v117 = vld [vmem:[%s4] sm:$0xff]
    %v118 = vld [vmem:[%s4 + $0x8] sm:$0xff]
    %v119 = vld [vmem:[%s4 + $0x10] sm:$0xff]
    %v120 = vld [vmem:[%s4 + $0x18] sm:$0xff]
    %v121 = vld [vmem:[%s5] sm:$0x1]
    %v123 = vlaneseq
    %v124 = vshrl.u32 %v123, 7
    %v125 = vsub.s32 0, %v124
    %v126 = vrot.slane %v121, %v125
    %vm128 = vcmask 261120
    %v130 = vsel %vm128, %v116, 0
    %132 = vmatprep.subr.mxu0 0.0
    %133 = vmatpush1.msra.mxu0 %v117
    %134 = vmatprep.subr.mxu0 0.0
    %135 = vmatpush1.msra.mxu0 %v118
    %136 = vmatprep.subr.mxu0 0.0
    %137 = vmatpush1.msra.mxu0 %v119
    %138 = vmatprep.subr.mxu0 0.0
    %139 = vmatpush1.msra.mxu0 %v120
    %140 = vmatprep.subr.mxu0 0.0
    %141 = vmatpush1.msra.mxu0 0.0
    %142 = vmatprep.subr.mxu0 0.0
    %143 = vmatpush1.msra.mxu0 0.0
    %144 = vmatprep.subr.mxu0 0.0
    %145 = vmatpush1.msra.mxu0 0.0
    %146 = vmatprep.subr.mxu0 0.0
    %147 = vmatpush1.msra.mxu0 0.0
    %148 = vmatprep.subr.mxu0 0.0
    %149 = vmatpush1.msra.mxu0 0.0
    %150 = vmatprep.subr.mxu0 0.0
    %151 = vmatpush1.msra.mxu0 0.0
    %152 = vmatprep.subr.mxu0 0.0
    %153 = vmatpush1.msra.mxu0 0.0
    %154 = vmatprep.subr.mxu0 0.0
    %155 = vmatpush1.msra.mxu0 0.0
    %156 = vmatprep.subr.mxu0 0.0
    %157 = vmatpush1.msra.mxu0 0.0
    %158 = vmatprep.subr.mxu0 0.0
    %159 = vmatpush1.msra.mxu0 0.0
    %160 = vmatprep.subr.mxu0 0.0
    %161 = vmatpush1.msra.mxu0 0.0
    %162 = vmatprep.subr.mxu0 0.0
    %163 = vmatpush1.msra.mxu0 0.0
    %164 = vmatprep.subr.mxu0 0.0
    %165 = vmatpush1.msra.mxu0 0.0
    %166 = vmatprep.subr.mxu0 0.0
    %167 = vmatpush1.msra.mxu0 0.0
    %168 = vmatprep.subr.mxu0 0.0
    %169 = vmatpush1.msra.mxu0 0.0
    %170 = vmatprep.subr.mxu0 0.0
    %171 = vmatpush1.msra.mxu0 0.0
    %172 = vmatprep.subr.mxu0 0.0
    %173 = vmatpush1.msra.mxu0 0.0
    %174 = vmatprep.subr.mxu0 0.0
    %175 = vmatpush1.msra.mxu0 0.0
    %176 = vmatprep.subr.mxu0 0.0
    %177 = vmatpush1.msra.mxu0 0.0
    %178 = vmatprep.subr.mxu0 0.0
    %179 = vmatpush1.msra.mxu0 0.0
    %180 = vmatprep.subr.mxu0 0.0
    %181 = vmatpush1.msra.mxu0 0.0
    %182 = vmatprep.subr.mxu0 0.0
    %183 = vmatpush1.msra.mxu0 0.0
    %184 = vmatprep.subr.mxu0 0.0
    %185 = vmatpush1.msra.mxu0 0.0
    %186 = vmatprep.subr.mxu0 0.0
    %187 = vmatpush1.msra.mxu0 0.0
    %188 = vmatprep.subr.mxu0 0.0
    %189 = vmatpush1.msra.mxu0 0.0
    %190 = vmatprep.subr.mxu0 0.0
    %191 = vmatpush1.msra.mxu0 0.0
    %192 = vmatprep.subr.mxu0 0.0
    %193 = vmatpush1.msra.mxu0 0.0
    %194 = vmatprep.subr.mxu0 0.0
    %195 = vmatpush1.msra.mxu0 0.0
    %196 = vmatprep.mubr.f32.mxu0 0.0
    %197 = vmatmul.mubr.f32.gmra.mrb[0].mxu0 %v130
    %v198 = vpop.f32.mrb[0].mxu0
    %v199 = vadd.f32 %v126, %v198
    %v200 = vpop.f32.mrb[0].mxu0
    %201 = vdwg.mxu0
    %v202 = vmax.f32 %v199, 0.0
    %v203 = vld [vmem:[%s6] sm:$0xff]
    %v204 = vld [vmem:[%s6 + $0x8] sm:$0xff]
    %v205 = vld [vmem:[%s6 + $0x10] sm:$0xff]
    %v206 = vld [vmem:[%s6 + $0x18] sm:$0xff]
    %v207 = vld [vmem:[%s7] sm:$0x1]
    %v209 = vlaneseq
    %v210 = vshrl.u32 %v209, 7
    %v211 = vsub.s32 0, %v210
    %v212 = vrot.slane %v207, %v211
    %v215 = vsel %vm128, %v202, 0
    %217 = vmatprep.subr.mxu0 0.0
    %218 = vmatpush1.msra.mxu0 %v203
    %219 = vmatprep.subr.mxu0 0.0
    %220 = vmatpush1.msra.mxu0 %v204
    %221 = vmatprep.subr.mxu0 0.0
    %222 = vmatpush1.msra.mxu0 %v205
    %223 = vmatprep.subr.mxu0 0.0
    %224 = vmatpush1.msra.mxu0 %v206
    %225 = vmatprep.subr.mxu0 0.0
    %226 = vmatpush1.msra.mxu0 0.0
    %227 = vmatprep.subr.mxu0 0.0
    %228 = vmatpush1.msra.mxu0 0.0
    %229 = vmatprep.subr.mxu0 0.0
    %230 = vmatpush1.msra.mxu0 0.0
    %231 = vmatprep.subr.mxu0 0.0
    %232 = vmatpush1.msra.mxu0 0.0
    %233 = vmatprep.subr.mxu0 0.0
    %234 = vmatpush1.msra.mxu0 0.0
    %235 = vmatprep.subr.mxu0 0.0
    %236 = vmatpush1.msra.mxu0 0.0
    %237 = vmatprep.subr.mxu0 0.0
    %238 = vmatpush1.msra.mxu0 0.0
    %239 = vmatprep.subr.mxu0 0.0
    %240 = vmatpush1.msra.mxu0 0.0
    %241 = vmatprep.subr.mxu0 0.0
    %242 = vmatpush1.msra.mxu0 0.0
    %243 = vmatprep.subr.mxu0 0.0
    %244 = vmatpush1.msra.mxu0 0.0
    %245 = vmatprep.subr.mxu0 0.0
    %246 = vmatpush1.msra.mxu0 0.0
    %247 = vmatprep.subr.mxu0 0.0
    %248 = vmatpush1.msra.mxu0 0.0
    %249 = vmatprep.subr.mxu0 0.0
    %250 = vmatpush1.msra.mxu0 0.0
    %251 = vmatprep.subr.mxu0 0.0
    %252 = vmatpush1.msra.mxu0 0.0
    %253 = vmatprep.subr.mxu0 0.0
    %254 = vmatpush1.msra.mxu0 0.0
    %255 = vmatprep.subr.mxu0 0.0
    %256 = vmatpush1.msra.mxu0 0.0
    %257 = vmatprep.subr.mxu0 0.0
    %258 = vmatpush1.msra.mxu0 0.0
    %259 = vmatprep.subr.mxu0 0.0
    %260 = vmatpush1.msra.mxu0 0.0
    %261 = vmatprep.subr.mxu0 0.0
    %262 = vmatpush1.msra.mxu0 0.0
    %263 = vmatprep.subr.mxu0 0.0
    %264 = vmatpush1.msra.mxu0 0.0
    %265 = vmatprep.subr.mxu0 0.0
    %266 = vmatpush1.msra.mxu0 0.0
    %267 = vmatprep.subr.mxu0 0.0
    %268 = vmatpush1.msra.mxu0 0.0
    %269 = vmatprep.subr.mxu0 0.0
    %270 = vmatpush1.msra.mxu0 0.0
    %271 = vmatprep.subr.mxu0 0.0
    %272 = vmatpush1.msra.mxu0 0.0
    %273 = vmatprep.subr.mxu0 0.0
    %274 = vmatpush1.msra.mxu0 0.0
    %275 = vmatprep.subr.mxu0 0.0
    %276 = vmatpush1.msra.mxu0 0.0
    %277 = vmatprep.subr.mxu0 0.0
    %278 = vmatpush1.msra.mxu0 0.0
    %279 = vmatprep.subr.mxu0 0.0
    %280 = vmatpush1.msra.mxu0 0.0
    %281 = vmatprep.mubr.f32.mxu0 0.0
    %282 = vmatmul.mubr.f32.gmra.mrb[0].mxu0 %v215
    %v283 = vpop.f32.mrb[0].mxu0
    %v284 = vadd.f32 %v212, %v283
    %v285 = vpop.f32.mrb[0].mxu0
    %286 = vdwg.mxu0
    %v287 = vstv %s32
    %v288 = vmul.f32 %v287, %v284
    %vm289 = vcmask 58368
    %v290 = vsel %vm289, %v288, -inf
    %291 = vmax.xlane.f32.xlu0 %v290
    %v292 = vpop.xlane.xlu0 %291
    %v293 = vsub.f32 %v288, %v292
    %v294 = vmul.f32 %v293, 1.442695
    %v295 = vpow.pop %v294
    %v296 = vsel %vm289, %v295, 0.0
    %297 = vadd.xlane.f32.xlu0 %v296
    %v298 = vpop.xlane.xlu0 %297
    %v299 = vrcp.pop %v298
    %v300 = vmul.f32 %v295, %v299
    %301 = vst.msk [vmem:[#allocation3] sm:$0x3] %vm289, %v300
    // Predicated region
    $region34: #{policy_forward.1} parent=1 // pred_check
      _
    $region35: #{policy_forward.1} parent=1 // pred_check_branch
      %303 = sbr.rel (0) target = $region37
    $region36: #{policy_forward.1} parent=1 // pred_region
      %s305 = ssub.s32 32, 32
      %306 = vsyncadd [#allocation4], %s305
      %s308 = sshll.u32 [#allocation3], 4
      %s309 = int_to_ptr.vmem [resolvable:$true] %s308
      %311 = dma.vmem_to_hbm [thread:$0]  %s309, 32, %s8, [#allocation4]
    $region37: #{policy_forward.1} parent=1 // pred_fallthru
      _
    // Predicated region
    $region38: #{policy_forward.1} parent=1 // pred_check
      _
    $region39: #{policy_forward.1} parent=1 // pred_check_branch
      %313 = sbr.rel (0) target = $region41
    $region40: #{policy_forward.1} parent=1 // pred_region
      %314 = dma.done [#allocation4], 32
    $region41: #{policy_forward.1} parent=1 // pred_fallthru
      _
    %315 = vsyncpa [#allocation4], 1

</llo_original>
